<compile_context>
chip_gen: v5e
topology: v5e:2x2
jax: 0.10.0
libtpu: 0.0.40
codegen_flags: <defaults>
</compile_context>

<pallas_src>
import functools

import jax
import jax.numpy as jnp
from jax.experimental import pallas as pl
from jax.experimental.pallas import tpu as pltpu


# ----------------------------- kernel ---------------------------------------


def _inv_mlp_kernel(x_ref,
                    w1f_ref, b1f_ref, w2f_ref, b2f_ref,
                    w1g_ref, b1g_ref, w2g_ref, b2g_ref,
                    o_ref,
                    *, rev: bool, n_blocks: int, half: int, mxu_dtype):
    """Runs the whole additive-coupling stack on one batch tile.

    Layout: batch-major (TB, D) blocks; the block spans the full feature dim
    D, so the HBM DMA per grid step is one contiguous read and one contiguous
    write of the tile.  Feature split/merge (lane offset `half`) is done
    in-register (RoPE-style lane slices / concat).
    """
    x = x_ref[...].astype(jnp.float32)            # (TB, D)
    a = x[:, :half]                               # (TB, half)
    b = x[:, half:]                               # (TB, half)

    def subnet(u, w1, b1, w2, b2):
        # u: (TB, half); w1: (half, hidden); w2: (hidden, half); biases (1, .)
        t = jnp.dot(u.astype(mxu_dtype), w1,
                    preferred_element_type=jnp.float32) + b1
        t = jnp.maximum(t, 0.0)
        return jnp.dot(t.astype(mxu_dtype), w2,
                       preferred_element_type=jnp.float32) + b2

    # Static unroll is fine for small n_blocks (<=4); for deeper stacks switch
    # to lax.fori_loop / a grid axis over blocks to bound live ranges.
    block_order = range(n_blocks) if not rev else range(n_blocks - 1, -1, -1)
    for k in block_order:
        if not rev:
            # forward:  y1 = x1 + F(x2) ; y2 = x2 + G(y1)
            a = a + subnet(b, w1f_ref[k], b1f_ref[k], w2f_ref[k], b2f_ref[k])
            b = b + subnet(a, w1g_ref[k], b1g_ref[k], w2g_ref[k], b2g_ref[k])
        else:
            # inverse:  x2 = y2 - G(y1) ; x1 = y1 - F(x2)
            b = b - subnet(a, w1g_ref[k], b1g_ref[k], w2g_ref[k], b2g_ref[k])
            a = a - subnet(b, w1f_ref[k], b1f_ref[k], w2f_ref[k], b2f_ref[k])

    # Single full-block store in the caller's dtype.
    o_ref[...] = jnp.concatenate([a, b], axis=-1).astype(o_ref.dtype)


# ----------------------------- wrapper ---------------------------------------


class PallasModel:
    """JAX/Pallas equivalent of the PyTorch `Model` (wraps an invertible MLP)."""

    def __init__(self, dim=32, hidden=64, n_blocks=2,
                 max_batch_tile=2048, min_grid_steps=8,
                 mxu_dtype=jnp.float32, key=None):
        assert dim % 2 == 0
        assert dim % 16 == 0 and hidden % 8 == 0, "keep sublane-aligned halves"
        self.dim = dim
        self.half = dim // 2
        self.hidden = hidden
        self.n_blocks = n_blocks
        # Adaptive batch tiling parameters (see _tile()).
        self.max_batch_tile = int(max_batch_tile)
        self.min_grid_steps = int(min_grid_steps)
        assert self.max_batch_tile % 128 == 0
        # Weights are stored in this dtype so there is no per-step cast inside
        # the kernel.  f32 by default (exact inverse, exact vs. reference);
        # bf16 for full-rate MXU on v6e/v7x.
        self.mxu_dtype = mxu_dtype

        if key is None:
            key = jax.random.PRNGKey(0)
        keys = jax.random.split(key, 4)
        scale1 = 1.0 / jnp.sqrt(self.half)
        scale2 = 1.0 / jnp.sqrt(hidden)

        def winit(k, shape, scale):
            w = jax.random.normal(k, shape, dtype=jnp.float32) * scale
            return w.astype(mxu_dtype)

        # Stacked per-block parameters for subnets F and G, math-friendly
        # (in, out) layout for batch-major activations:
        #   W1: (nb, half, hidden)   W2: (nb, hidden, half)
        #   b1: (nb, 1, hidden)      b2: (nb, 1, half)
        nb, hd, half = n_blocks, hidden, self.half
        self.w1f = winit(keys[0], (nb, half, hd), scale1)
        self.w2f = winit(keys[1], (nb, hd, half), scale2)
        self.w1g = winit(keys[2], (nb, half, hd), scale1)
        self.w2g = winit(keys[3], (nb, hd, half), scale2)
        self.b1f = jnp.zeros((nb, 1, hd), jnp.float32)
        self.b2f = jnp.zeros((nb, 1, half), jnp.float32)
        self.b1g = jnp.zeros((nb, 1, hd), jnp.float32)
        self.b2g = jnp.zeros((nb, 1, half), jnp.float32)

    # Pure-JAX reference (batch-major) for correctness checks.
    def reference(self, x, rev=False):
        half = self.half
        h1 = x[:, :half].astype(jnp.float32)
        h2 = x[:, half:].astype(jnp.float32)

        def sub(u, w1, b1, w2, b2):
            t = jnp.dot(u.astype(self.mxu_dtype), w1,
                        preferred_element_type=jnp.float32) + b1
            t = jnp.maximum(t, 0.0)
            return jnp.dot(t.astype(self.mxu_dtype), w2,
                           preferred_element_type=jnp.float32) + b2

        order = (range(self.n_blocks) if not rev
                 else range(self.n_blocks - 1, -1, -1))
        for k in order:
            if not rev:
                h1 = h1 + sub(h2, self.w1f[k], self.b1f[k], self.w2f[k], self.b2f[k])
                h2 = h2 + sub(h1, self.w1g[k], self.b1g[k], self.w2g[k], self.b2g[k])
            else:
                h2 = h2 - sub(h1, self.w1g[k], self.b1g[k], self.w2g[k], self.b2g[k])
                h1 = h1 - sub(h2, self.w1f[k], self.b1f[k], self.w2f[k], self.b2f[k])
        return jnp.concatenate([h1, h2], axis=1).astype(x.dtype)

    def _tile(self, B):
        """Adaptive batch tile: pad only to 128-multiples; tile up to
        max_batch_tile rows, but keep >= min_grid_steps steps when possible."""
        chunks = pl.cdiv(B, 128)                     # 128-row groups needed
        cpt = max(1, min(self.max_batch_tile // 128,
                         chunks // self.min_grid_steps))
        steps = pl.cdiv(chunks, cpt)
        return cpt * 128, steps

    def __call__(self, x, rev=False):
        B, D = x.shape
        assert D == self.dim
        half, hd, nb = self.half, self.hidden, self.n_blocks

        TB, steps = self._tile(B)
        B_pad = steps * TB

        # Only batch padding (to a 128-multiple tile); no transposes, no
        # slices, no dtype changes in the wrapper.
        xp = x if B_pad == B else jnp.pad(x, ((0, B_pad - B), (0, 0)))

        kernel = functools.partial(
            _inv_mlp_kernel, rev=bool(rev), n_blocks=nb, half=half,
            mxu_dtype=self.mxu_dtype)

        # Activations: batch-major (TB, D) tiles; block spans the full feature
        # dim so the HBM DMA is contiguous.
        x_spec = pl.BlockSpec((TB, D), lambda i: (i, 0))
        # Weights: replicated to every batch tile (constant index_map) ->
        # VMEM-resident across grid steps.
        w_spec = lambda shape: pl.BlockSpec(shape, lambda i: (0, 0, 0))

        out = pl.pallas_call(
            kernel,
            out_shape=jax.ShapeDtypeStruct((B_pad, D), x.dtype),
            grid_spec=pltpu.PrefetchScalarGridSpec(
                num_scalar_prefetch=0,
                grid=(steps,),
                in_specs=[
                    x_spec,                               # x
                    w_spec((nb, half, hd)),               # w1f
                    w_spec((nb, 1, hd)),                  # b1f
                    w_spec((nb, hd, half)),               # w2f
                    w_spec((nb, 1, half)),                # b2f
                    w_spec((nb, half, hd)),               # w1g
                    w_spec((nb, 1, hd)),                  # b1g
                    w_spec((nb, hd, half)),               # w2g
                    w_spec((nb, 1, half)),                # b2g
                ],
                out_specs=x_spec,
            ),
            compiler_params=pltpu.CompilerParams(
                dimension_semantics=("parallel",)),
        )(xp, self.w1f, self.b1f, self.w2f, self.b2f,
          self.w1g, self.b1g, self.w2g, self.b2g)

        return out if B_pad == B else out[:B]


# ----------------------------- demo / check ----------------------------------

if __name__ == "__main__":
    key = jax.random.PRNGKey(0)
    k_x, k_p, k_x2 = jax.random.split(key, 3)

    B, D = 8, 32
    x = jax.random.normal(k_x, (B, D), dtype=jnp.float32)

    model = PallasModel(dim=D, hidden=64, n_blocks=2, key=k_p)

    # forward pass
    y = jax.block_until_ready(model(x, rev=False))
    assert y.shape == (B, D) and y.dtype == x.dtype

    # forward matches the pure-JAX reference
    y_ref = model.reference(x, rev=False)
    assert jnp.max(jnp.abs(y - y_ref)) < 1e-4, "forward mismatch vs reference"

    # reverse pass inverts the forward pass (additive coupling)
    x_rec = jax.block_until_ready(model(y, rev=True))
    assert jnp.max(jnp.abs(x_rec - x)) < 1e-4, "reverse pass did not invert forward"

    # exercise the multi-grid-step + non-tile-aligned batch path
    B2 = 300
    x2 = jax.random.normal(k_x2, (B2, D), dtype=jnp.float32)
    y2 = jax.block_until_ready(model(x2, rev=False))
    assert y2.shape == (B2, D)
    assert jnp.max(jnp.abs(y2 - model.reference(x2))) < 1e-4, "padded-batch mismatch"
    x2_rec = jax.block_until_ready(model(y2, rev=True))
    assert jnp.max(jnp.abs(x2_rec - x2)) < 1e-4, "padded-batch reverse mismatch"

    print("KERNEL_OK")
</pallas_src>

<mosaic_0001>
module attributes {stable_mosaic.version = 11 : i64} {
  func.func @_inv_mlp_kernel(%arg0: i32, %arg1: memref<128x32xf32, #tpu.memory_space<vmem>>, %arg2: memref<2x16x64xf32, #tpu.memory_space<vmem>>, %arg3: memref<2x1x64xf32, #tpu.memory_space<vmem>>, %arg4: memref<2x64x16xf32, #tpu.memory_space<vmem>>, %arg5: memref<2x1x16xf32, #tpu.memory_space<vmem>>, %arg6: memref<2x16x64xf32, #tpu.memory_space<vmem>>, %arg7: memref<2x1x64xf32, #tpu.memory_space<vmem>>, %arg8: memref<2x64x16xf32, #tpu.memory_space<vmem>>, %arg9: memref<2x1x16xf32, #tpu.memory_space<vmem>>, %arg10: memref<128x32xf32, #tpu.memory_space<vmem>>) attributes {dimension_semantics = [#tpu.dimension_semantics<parallel>], iteration_bounds = array<i64: 1>, scalar_prefetch = 0 : i64, scratch_operands = 0 : i64, tpu.core_type = #tpu.core_type<tc>, window_params = [{transform_indices = @transform_0, window_bounds = array<i64: 128, 32>}, {pipeline_mode = #tpu.pipeline_mode<synchronous>, transform_indices = @transform_1, window_bounds = array<i64: 2, 16, 64>}, {pipeline_mode = #tpu.pipeline_mode<synchronous>, transform_indices = @transform_2, window_bounds = array<i64: 2, 1, 64>}, {pipeline_mode = #tpu.pipeline_mode<synchronous>, transform_indices = @transform_3, window_bounds = array<i64: 2, 64, 16>}, {pipeline_mode = #tpu.pipeline_mode<synchronous>, transform_indices = @transform_4, window_bounds = array<i64: 2, 1, 16>}, {pipeline_mode = #tpu.pipeline_mode<synchronous>, transform_indices = @transform_5, window_bounds = array<i64: 2, 16, 64>}, {pipeline_mode = #tpu.pipeline_mode<synchronous>, transform_indices = @transform_6, window_bounds = array<i64: 2, 1, 64>}, {pipeline_mode = #tpu.pipeline_mode<synchronous>, transform_indices = @transform_7, window_bounds = array<i64: 2, 64, 16>}, {pipeline_mode = #tpu.pipeline_mode<synchronous>, transform_indices = @transform_8, window_bounds = array<i64: 2, 1, 16>}, {transform_indices = @transform_9, window_bounds = array<i64: 128, 32>}]} {
    %c0 = arith.constant 0 : index
    %c0_0 = arith.constant 0 : index
    %0 = vector.load %arg1[%c0, %c0_0] : memref<128x32xf32, #tpu.memory_space<vmem>>, vector<128x32xf32>
    %1 = vector.extract_strided_slice %0 {offsets = [0, 0], sizes = [128, 16], strides = [1, 1]} : vector<128x32xf32> to vector<128x16xf32>
    %2 = vector.extract_strided_slice %0 {offsets = [0, 16], sizes = [128, 16], strides = [1, 1]} : vector<128x32xf32> to vector<128x16xf32>
    %c0_1 = arith.constant 0 : index
    %c0_2 = arith.constant 0 : index
    %c0_3 = arith.constant 0 : index
    %3 = vector.load %arg2[%c0_1, %c0_2, %c0_3] : memref<2x16x64xf32, #tpu.memory_space<vmem>>, vector<1x16x64xf32>
    %4 = vector.shape_cast %3 : vector<1x16x64xf32> to vector<16x64xf32>
    %c0_4 = arith.constant 0 : index
    %c0_5 = arith.constant 0 : index
    %c0_6 = arith.constant 0 : index
    %5 = vector.load %arg3[%c0_4, %c0_5, %c0_6] : memref<2x1x64xf32, #tpu.memory_space<vmem>>, vector<1x1x64xf32>
    %6 = vector.shape_cast %5 : vector<1x1x64xf32> to vector<1x64xf32>
    %c0_7 = arith.constant 0 : index
    %c0_8 = arith.constant 0 : index
    %c0_9 = arith.constant 0 : index
    %7 = vector.load %arg4[%c0_7, %c0_8, %c0_9] : memref<2x64x16xf32, #tpu.memory_space<vmem>>, vector<1x64x16xf32>
    %8 = vector.shape_cast %7 : vector<1x64x16xf32> to vector<64x16xf32>
    %c0_10 = arith.constant 0 : index
    %c0_11 = arith.constant 0 : index
    %c0_12 = arith.constant 0 : index
    %9 = vector.load %arg5[%c0_10, %c0_11, %c0_12] : memref<2x1x16xf32, #tpu.memory_space<vmem>>, vector<1x1x16xf32>
    %10 = vector.shape_cast %9 : vector<1x1x16xf32> to vector<1x16xf32>
    %cst = arith.constant dense<0.000000e+00> : vector<128x64xf32>
    %11 = tpu.matmul %2, %4, %cst {dimension_numbers = #tpu.dot_dimension_numbers<[1], [0], [0], [1], [0, 0, 1, 1], [], []>} : vector<128x16xf32>, vector<16x64xf32>, vector<128x64xf32> -> vector<128x64xf32>
    %12 = vector.broadcast %6 : vector<1x64xf32> to vector<128x64xf32>
    %13 = arith.addf %11, %12 : vector<128x64xf32>
    %cst_13 = arith.constant 0.000000e+00 : f32
    %14 = vector.broadcast %cst_13 : f32 to vector<128x64xf32>
    %15 = arith.maximumf %13, %14 : vector<128x64xf32>
    %cst_14 = arith.constant dense<0.000000e+00> : vector<128x16xf32>
    %16 = tpu.matmul %15, %8, %cst_14 {dimension_numbers = #tpu.dot_dimension_numbers<[1], [0], [0], [1], [0, 0, 1, 1], [], []>} : vector<128x64xf32>, vector<64x16xf32>, vector<128x16xf32> -> vector<128x16xf32>
    %17 = vector.broadcast %10 : vector<1x16xf32> to vector<128x16xf32>
    %18 = arith.addf %16, %17 : vector<128x16xf32>
    %19 = arith.addf %1, %18 : vector<128x16xf32>
    %c0_15 = arith.constant 0 : index
    %c0_16 = arith.constant 0 : index
    %c0_17 = arith.constant 0 : index
    %20 = vector.load %arg6[%c0_15, %c0_16, %c0_17] : memref<2x16x64xf32, #tpu.memory_space<vmem>>, vector<1x16x64xf32>
    %21 = vector.shape_cast %20 : vector<1x16x64xf32> to vector<16x64xf32>
    %c0_18 = arith.constant 0 : index
    %c0_19 = arith.constant 0 : index
    %c0_20 = arith.constant 0 : index
    %22 = vector.load %arg7[%c0_18, %c0_19, %c0_20] : memref<2x1x64xf32, #tpu.memory_space<vmem>>, vector<1x1x64xf32>
    %23 = vector.shape_cast %22 : vector<1x1x64xf32> to vector<1x64xf32>
    %c0_21 = arith.constant 0 : index
    %c0_22 = arith.constant 0 : index
    %c0_23 = arith.constant 0 : index
    %24 = vector.load %arg8[%c0_21, %c0_22, %c0_23] : memref<2x64x16xf32, #tpu.memory_space<vmem>>, vector<1x64x16xf32>
    %25 = vector.shape_cast %24 : vector<1x64x16xf32> to vector<64x16xf32>
    %c0_24 = arith.constant 0 : index
    %c0_25 = arith.constant 0 : index
    %c0_26 = arith.constant 0 : index
    %26 = vector.load %arg9[%c0_24, %c0_25, %c0_26] : memref<2x1x16xf32, #tpu.memory_space<vmem>>, vector<1x1x16xf32>
    %27 = vector.shape_cast %26 : vector<1x1x16xf32> to vector<1x16xf32>
    %cst_27 = arith.constant dense<0.000000e+00> : vector<128x64xf32>
    %28 = tpu.matmul %19, %21, %cst_27 {dimension_numbers = #tpu.dot_dimension_numbers<[1], [0], [0], [1], [0, 0, 1, 1], [], []>} : vector<128x16xf32>, vector<16x64xf32>, vector<128x64xf32> -> vector<128x64xf32>
    %29 = vector.broadcast %23 : vector<1x64xf32> to vector<128x64xf32>
    %30 = arith.addf %28, %29 : vector<128x64xf32>
    %cst_28 = arith.constant 0.000000e+00 : f32
    %31 = vector.broadcast %cst_28 : f32 to vector<128x64xf32>
    %32 = arith.maximumf %30, %31 : vector<128x64xf32>
    %cst_29 = arith.constant dense<0.000000e+00> : vector<128x16xf32>
    %33 = tpu.matmul %32, %25, %cst_29 {dimension_numbers = #tpu.dot_dimension_numbers<[1], [0], [0], [1], [0, 0, 1, 1], [], []>} : vector<128x64xf32>, vector<64x16xf32>, vector<128x16xf32> -> vector<128x16xf32>
    %34 = vector.broadcast %27 : vector<1x16xf32> to vector<128x16xf32>
    %35 = arith.addf %33, %34 : vector<128x16xf32>
    %36 = arith.addf %2, %35 : vector<128x16xf32>
    %c1 = arith.constant 1 : index
    %c0_30 = arith.constant 0 : index
    %c0_31 = arith.constant 0 : index
    %37 = vector.load %arg2[%c1, %c0_30, %c0_31] : memref<2x16x64xf32, #tpu.memory_space<vmem>>, vector<1x16x64xf32>
    %38 = vector.shape_cast %37 : vector<1x16x64xf32> to vector<16x64xf32>
    %c1_32 = arith.constant 1 : index
    %c0_33 = arith.constant 0 : index
    %c0_34 = arith.constant 0 : index
    %39 = vector.load %arg3[%c1_32, %c0_33, %c0_34] : memref<2x1x64xf32, #tpu.memory_space<vmem>>, vector<1x1x64xf32>
    %40 = vector.shape_cast %39 : vector<1x1x64xf32> to vector<1x64xf32>
    %c1_35 = arith.constant 1 : index
    %c0_36 = arith.constant 0 : index
    %c0_37 = arith.constant 0 : index
    %41 = vector.load %arg4[%c1_35, %c0_36, %c0_37] : memref<2x64x16xf32, #tpu.memory_space<vmem>>, vector<1x64x16xf32>
    %42 = vector.shape_cast %41 : vector<1x64x16xf32> to vector<64x16xf32>
    %c1_38 = arith.constant 1 : index
    %c0_39 = arith.constant 0 : index
    %c0_40 = arith.constant 0 : index
    %43 = vector.load %arg5[%c1_38, %c0_39, %c0_40] : memref<2x1x16xf32, #tpu.memory_space<vmem>>, vector<1x1x16xf32>
    %44 = vector.shape_cast %43 : vector<1x1x16xf32> to vector<1x16xf32>
    %cst_41 = arith.constant dense<0.000000e+00> : vector<128x64xf32>
    %45 = tpu.matmul %36, %38, %cst_41 {dimension_numbers = #tpu.dot_dimension_numbers<[1], [0], [0], [1], [0, 0, 1, 1], [], []>} : vector<128x16xf32>, vector<16x64xf32>, vector<128x64xf32> -> vector<128x64xf32>
    %46 = vector.broadcast %40 : vector<1x64xf32> to vector<128x64xf32>
    %47 = arith.addf %45, %46 : vector<128x64xf32>
    %cst_42 = arith.constant 0.000000e+00 : f32
    %48 = vector.broadcast %cst_42 : f32 to vector<128x64xf32>
    %49 = arith.maximumf %47, %48 : vector<128x64xf32>
    %cst_43 = arith.constant dense<0.000000e+00> : vector<128x16xf32>
    %50 = tpu.matmul %49, %42, %cst_43 {dimension_numbers = #tpu.dot_dimension_numbers<[1], [0], [0], [1], [0, 0, 1, 1], [], []>} : vector<128x64xf32>, vector<64x16xf32>, vector<128x16xf32> -> vector<128x16xf32>
    %51 = vector.broadcast %44 : vector<1x16xf32> to vector<128x16xf32>
    %52 = arith.addf %50, %51 : vector<128x16xf32>
    %53 = arith.addf %19, %52 : vector<128x16xf32>
    %c1_44 = arith.constant 1 : index
    %c0_45 = arith.constant 0 : index
    %c0_46 = arith.constant 0 : index
    %54 = vector.load %arg6[%c1_44, %c0_45, %c0_46] : memref<2x16x64xf32, #tpu.memory_space<vmem>>, vector<1x16x64xf32>
    %55 = vector.shape_cast %54 : vector<1x16x64xf32> to vector<16x64xf32>
    %c1_47 = arith.constant 1 : index
    %c0_48 = arith.constant 0 : index
    %c0_49 = arith.constant 0 : index
    %56 = vector.load %arg7[%c1_47, %c0_48, %c0_49] : memref<2x1x64xf32, #tpu.memory_space<vmem>>, vector<1x1x64xf32>
    %57 = vector.shape_cast %56 : vector<1x1x64xf32> to vector<1x64xf32>
    %c1_50 = arith.constant 1 : index
    %c0_51 = arith.constant 0 : index
    %c0_52 = arith.constant 0 : index
    %58 = vector.load %arg8[%c1_50, %c0_51, %c0_52] : memref<2x64x16xf32, #tpu.memory_space<vmem>>, vector<1x64x16xf32>
    %59 = vector.shape_cast %58 : vector<1x64x16xf32> to vector<64x16xf32>
    %c1_53 = arith.constant 1 : index
    %c0_54 = arith.constant 0 : index
    %c0_55 = arith.constant 0 : index
    %60 = vector.load %arg9[%c1_53, %c0_54, %c0_55] : memref<2x1x16xf32, #tpu.memory_space<vmem>>, vector<1x1x16xf32>
    %61 = vector.shape_cast %60 : vector<1x1x16xf32> to vector<1x16xf32>
    %cst_56 = arith.constant dense<0.000000e+00> : vector<128x64xf32>
    %62 = tpu.matmul %53, %55, %cst_56 {dimension_numbers = #tpu.dot_dimension_numbers<[1], [0], [0], [1], [0, 0, 1, 1], [], []>} : vector<128x16xf32>, vector<16x64xf32>, vector<128x64xf32> -> vector<128x64xf32>
    %63 = vector.broadcast %57 : vector<1x64xf32> to vector<128x64xf32>
    %64 = arith.addf %62, %63 : vector<128x64xf32>
    %cst_57 = arith.constant 0.000000e+00 : f32
    %65 = vector.broadcast %cst_57 : f32 to vector<128x64xf32>
    %66 = arith.maximumf %64, %65 : vector<128x64xf32>
    %cst_58 = arith.constant dense<0.000000e+00> : vector<128x16xf32>
    %67 = tpu.matmul %66, %59, %cst_58 {dimension_numbers = #tpu.dot_dimension_numbers<[1], [0], [0], [1], [0, 0, 1, 1], [], []>} : vector<128x64xf32>, vector<64x16xf32>, vector<128x16xf32> -> vector<128x16xf32>
    %68 = vector.broadcast %61 : vector<1x16xf32> to vector<128x16xf32>
    %69 = arith.addf %67, %68 : vector<128x16xf32>
    %70 = arith.addf %36, %69 : vector<128x16xf32>
    %71 = tpu.concatenate %53, %70 in 1 : vector<128x16xf32>, vector<128x16xf32> -> vector<128x32xf32>
    %c0_59 = arith.constant 0 : index
    %c0_60 = arith.constant 0 : index
    %72 = vector.load %arg10[%c0_59, %c0_60] : memref<128x32xf32, #tpu.memory_space<vmem>>, vector<128x32xf32>
    tpu.vector_store %arg10[%c0_59, %c0_60], %71 {strides = array<i32>} : memref<128x32xf32, #tpu.memory_space<vmem>>, vector<128x32xf32>,
    return
  }
  func.func @transform_0(%arg0: i32) -> (i32, i32) {
    %c0_i32 = arith.constant 0 : i32
    %c0_i32_0 = arith.constant 0 : i32
    return %arg0, %c0_i32 : i32, i32
  }
  func.func @transform_1(%arg0: i32) -> (i32, i32, i32) {
    %c0_i32 = arith.constant 0 : i32
    %c0_i32_0 = arith.constant 0 : i32
    %c0_i32_1 = arith.constant 0 : i32
    %c0_i32_2 = arith.constant 0 : i32
    return %c0_i32, %c0_i32_0, %c0_i32_1 : i32, i32, i32
  }
  func.func @transform_2(%arg0: i32) -> (i32, i32, i32) {
    %c0_i32 = arith.constant 0 : i32
    %c0_i32_0 = arith.constant 0 : i32
    %c0_i32_1 = arith.constant 0 : i32
    %c0_i32_2 = arith.constant 0 : i32
    return %c0_i32, %c0_i32_0, %c0_i32_1 : i32, i32, i32
  }
  func.func @transform_3(%arg0: i32) -> (i32, i32, i32) {
    %c0_i32 = arith.constant 0 : i32
    %c0_i32_0 = arith.constant 0 : i32
    %c0_i32_1 = arith.constant 0 : i32
    %c0_i32_2 = arith.constant 0 : i32
    return %c0_i32, %c0_i32_0, %c0_i32_1 : i32, i32, i32
  }
  func.func @transform_4(%arg0: i32) -> (i32, i32, i32) {
    %c0_i32 = arith.constant 0 : i32
    %c0_i32_0 = arith.constant 0 : i32
    %c0_i32_1 = arith.constant 0 : i32
    %c0_i32_2 = arith.constant 0 : i32
    return %c0_i32, %c0_i32_0, %c0_i32_1 : i32, i32, i32
  }
  func.func @transform_5(%arg0: i32) -> (i32, i32, i32) {
    %c0_i32 = arith.constant 0 : i32
    %c0_i32_0 = arith.constant 0 : i32
    %c0_i32_1 = arith.constant 0 : i32
    %c0_i32_2 = arith.constant 0 : i32
    return %c0_i32, %c0_i32_0, %c0_i32_1 : i32, i32, i32
  }
  func.func @transform_6(%arg0: i32) -> (i32, i32, i32) {
    %c0_i32 = arith.constant 0 : i32
    %c0_i32_0 = arith.constant 0 : i32
    %c0_i32_1 = arith.constant 0 : i32
    %c0_i32_2 = arith.constant 0 : i32
    return %c0_i32, %c0_i32_0, %c0_i32_1 : i32, i32, i32
  }
  func.func @transform_7(%arg0: i32) -> (i32, i32, i32) {
    %c0_i32 = arith.constant 0 : i32
    %c0_i32_0 = arith.constant 0 : i32
    %c0_i32_1 = arith.constant 0 : i32
    %c0_i32_2 = arith.constant 0 : i32
    return %c0_i32, %c0_i32_0, %c0_i32_1 : i32, i32, i32
  }
  func.func @transform_8(%arg0: i32) -> (i32, i32, i32) {
    %c0_i32 = arith.constant 0 : i32
    %c0_i32_0 = arith.constant 0 : i32
    %c0_i32_1 = arith.constant 0 : i32
    %c0_i32_2 = arith.constant 0 : i32
    return %c0_i32, %c0_i32_0, %c0_i32_1 : i32, i32, i32
  }
  func.func @transform_9(%arg0: i32) -> (i32, i32) {
    %c0_i32 = arith.constant 0 : i32
    %c0_i32_0 = arith.constant 0 : i32
    return %arg0, %c0_i32 : i32, i32
  }
}

</mosaic_0001>

<llo_original>
// kernel: tpu_custom_call.1
$region0: #{tpu_custom_call.1}
  #allocation0 [shape = 'u32[]', space=smem, size = 0x4, offset = 0x4, fixed_abs, tag = 'smem constant byte address 0x4 - core index']
  #allocation1 [shape = 'u32[72,128]{1,0:T(1,128)}', space=vmem, size = 0x9000, scoped, tag = 'internal scratch']
  %s0 = inlined_call_operand.vmem [shape: f32[128,32], index: 0, kind: input, shape index: {}]
  %s1 = inlined_call_operand.vmem [shape: f32[2,16,64], index: 1, kind: input, shape index: {}]
  %s2 = inlined_call_operand.vmem [shape: f32[2,1,64], index: 2, kind: input, shape index: {}]
  %s3 = inlined_call_operand.vmem [shape: f32[2,64,16], index: 3, kind: input, shape index: {}]
  %s4 = inlined_call_operand.vmem [shape: f32[2,1,16], index: 4, kind: input, shape index: {}]
  %s5 = inlined_call_operand.vmem [shape: f32[2,16,64], index: 5, kind: input, shape index: {}]
  %s6 = inlined_call_operand.vmem [shape: f32[2,1,64], index: 6, kind: input, shape index: {}]
  %s7 = inlined_call_operand.vmem [shape: f32[2,64,16], index: 7, kind: input, shape index: {}]
  %s8 = inlined_call_operand.vmem [shape: f32[2,1,16], index: 8, kind: input, shape index: {}]
  %s9 = inlined_call_operand.vmem [shape: f32[128,32], index: 9, kind: output, shape index: {}]
  %s10 = sld [smem:[#allocation0]]
  $region46: #{tpu_custom_call.1} parent=0
    _
  %s12 = ssub.s32 1, %s10
  %s13 = scalar_select 0, %s12, %s10
  // Predicated region
  $region2: #{tpu_custom_call.1} parent=0 // pred_check
    _
  $region3: #{tpu_custom_call.1} parent=0 // pred_check_branch
    %15 = sbr.rel (0) target = $region5
  $region4: #{tpu_custom_call.1} parent=0 // pred_region
    _
  $region5: #{tpu_custom_call.1} parent=0 // pred_fallthru
    _
  // Predicated region
  $region6: #{tpu_custom_call.1} parent=0 // pred_check
    _
  $region7: #{tpu_custom_call.1} parent=0 // pred_check_branch
    %17 = sbr.rel (0) target = $region9
  $region8: #{tpu_custom_call.1} parent=0 // pred_region
    _
  $region9: #{tpu_custom_call.1} parent=0 // pred_fallthru
    _
  // Predicated region
  $region10: #{tpu_custom_call.1} parent=0 // pred_check
    _
  $region11: #{tpu_custom_call.1} parent=0 // pred_check_branch
    %19 = sbr.rel (0) target = $region13
  $region12: #{tpu_custom_call.1} parent=0 // pred_region
    _
  $region13: #{tpu_custom_call.1} parent=0 // pred_fallthru
    _
  // Predicated region
  $region14: #{tpu_custom_call.1} parent=0 // pred_check
    _
  $region15: #{tpu_custom_call.1} parent=0 // pred_check_branch
    %21 = sbr.rel (0) target = $region17
  $region16: #{tpu_custom_call.1} parent=0 // pred_region
    _
  $region17: #{tpu_custom_call.1} parent=0 // pred_fallthru
    _
  // Predicated region
  $region18: #{tpu_custom_call.1} parent=0 // pred_check
    _
  $region19: #{tpu_custom_call.1} parent=0 // pred_check_branch
    %23 = sbr.rel (0) target = $region21
  $region20: #{tpu_custom_call.1} parent=0 // pred_region
    _
  $region21: #{tpu_custom_call.1} parent=0 // pred_fallthru
    _
  // Predicated region
  $region22: #{tpu_custom_call.1} parent=0 // pred_check
    _
  $region23: #{tpu_custom_call.1} parent=0 // pred_check_branch
    %25 = sbr.rel (0) target = $region25
  $region24: #{tpu_custom_call.1} parent=0 // pred_region
    _
  $region25: #{tpu_custom_call.1} parent=0 // pred_fallthru
    _
  // Predicated region
  $region26: #{tpu_custom_call.1} parent=0 // pred_check
    _
  $region27: #{tpu_custom_call.1} parent=0 // pred_check_branch
    %27 = sbr.rel (0) target = $region29
  $region28: #{tpu_custom_call.1} parent=0 // pred_region
    _
  $region29: #{tpu_custom_call.1} parent=0 // pred_fallthru
    _
  // Predicated region
  $region30: #{tpu_custom_call.1} parent=0 // pred_check
    _
  $region31: #{tpu_custom_call.1} parent=0 // pred_check_branch
    %29 = sbr.rel (0) target = $region33
  $region32: #{tpu_custom_call.1} parent=0 // pred_region
    _
  $region33: #{tpu_custom_call.1} parent=0 // pred_fallthru
    _
  // Predicated region
  $region34: #{tpu_custom_call.1} parent=0 // pred_check
    _
  $region35: #{tpu_custom_call.1} parent=0 // pred_check_branch
    %31 = sbr.rel (0) target = $region37
  $region36: #{tpu_custom_call.1} parent=0 // pred_region
    _
  $region37: #{tpu_custom_call.1} parent=0 // pred_fallthru
    _
  %v32 = vld [vmem:[%s0] sm:$0xff]
  %v33 = vld [vmem:[%s0 + $0x8] sm:$0xff]
  %v34 = vld [vmem:[%s0 + $0x10] sm:$0xff]
  %v35 = vld [vmem:[%s0 + $0x18] sm:$0xff]
  %v36 = vld [vmem:[%s0 + $0x20] sm:$0xff]
  %v37 = vld [vmem:[%s0 + $0x28] sm:$0xff]
  %v38 = vld [vmem:[%s0 + $0x30] sm:$0xff]
  %v39 = vld [vmem:[%s0 + $0x38] sm:$0xff]
  %v40 = vld [vmem:[%s0 + $0x40] sm:$0xff]
  %v41 = vld [vmem:[%s0 + $0x48] sm:$0xff]
  %v42 = vld [vmem:[%s0 + $0x50] sm:$0xff]
  %v43 = vld [vmem:[%s0 + $0x58] sm:$0xff]
  %v44 = vld [vmem:[%s0 + $0x60] sm:$0xff]
  %v45 = vld [vmem:[%s0 + $0x68] sm:$0xff]
  %v46 = vld [vmem:[%s0 + $0x70] sm:$0xff]
  %v47 = vld [vmem:[%s0 + $0x78] sm:$0xff]
  %v48 = vld [vmem:[%s1] sm:$0xff]
  %v49 = vld [vmem:[%s1 + $0x8] sm:$0xff]
  %v50 = vld [vmem:[%s2] sm:$0x1]
  %v51 = vld [vmem:[%s3] sm:$0xff]
  %v52 = vld [vmem:[%s3 + $0x8] sm:$0xff]
  %v53 = vld [vmem:[%s3 + $0x10] sm:$0xff]
  %v54 = vld [vmem:[%s3 + $0x18] sm:$0xff]
  %v55 = vld [vmem:[%s3 + $0x20] sm:$0xff]
  %v56 = vld [vmem:[%s3 + $0x28] sm:$0xff]
  %v57 = vld [vmem:[%s3 + $0x30] sm:$0xff]
  %v58 = vld [vmem:[%s3 + $0x38] sm:$0xff]
  %v59 = vld [vmem:[%s4] sm:$0x1]
  %v61 = vperm.slane %v50, 0
  %79 = vrot.lane.b32.xlu0 %v32, 112
  %v80 = vpop.permute.xlu0 %79
  %81 = vrot.lane.b32.xlu0 %v33, 112
  %v82 = vpop.permute.xlu0 %81
  %83 = vrot.lane.b32.xlu0 %v34, 112
  %v84 = vpop.permute.xlu0 %83
  %85 = vrot.lane.b32.xlu0 %v35, 112
  %v86 = vpop.permute.xlu0 %85
  %87 = vrot.lane.b32.xlu0 %v36, 112
  %v88 = vpop.permute.xlu0 %87
  %89 = vrot.lane.b32.xlu0 %v37, 112
  %v90 = vpop.permute.xlu0 %89
  %91 = vrot.lane.b32.xlu0 %v38, 112
  %v92 = vpop.permute.xlu0 %91
  %93 = vrot.lane.b32.xlu0 %v39, 112
  %v94 = vpop.permute.xlu0 %93
  %95 = vrot.lane.b32.xlu0 %v40, 112
  %v96 = vpop.permute.xlu0 %95
  %97 = vrot.lane.b32.xlu0 %v41, 112
  %v98 = vpop.permute.xlu0 %97
  %99 = vrot.lane.b32.xlu0 %v42, 112
  %v100 = vpop.permute.xlu0 %99
  %101 = vrot.lane.b32.xlu0 %v43, 112
  %v102 = vpop.permute.xlu0 %101
  %103 = vrot.lane.b32.xlu0 %v44, 112
  %v104 = vpop.permute.xlu0 %103
  %105 = vrot.lane.b32.xlu0 %v45, 112
  %v106 = vpop.permute.xlu0 %105
  %107 = vrot.lane.b32.xlu0 %v46, 112
  %v108 = vpop.permute.xlu0 %107
  %109 = vrot.lane.b32.xlu0 %v47, 112
  %v110 = vpop.permute.xlu0 %109
  %vm111 = vcmask 130048
  %v112 = vsel %vm111, %v80, 0
  %v114 = vsel %vm111, %v82, 0
  %v116 = vsel %vm111, %v84, 0
  %v118 = vsel %vm111, %v86, 0
  %v120 = vsel %vm111, %v88, 0
  %v122 = vsel %vm111, %v90, 0
  %v124 = vsel %vm111, %v92, 0
  %v126 = vsel %vm111, %v94, 0
  %v128 = vsel %vm111, %v96, 0
  %v130 = vsel %vm111, %v98, 0
  %v132 = vsel %vm111, %v100, 0
  %v134 = vsel %vm111, %v102, 0
  %v136 = vsel %vm111, %v104, 0
  %v138 = vsel %vm111, %v106, 0
  %v140 = vsel %vm111, %v108, 0
  %v142 = vsel %vm111, %v110, 0
  %144 = vmatpush.msra.mxu0 0.0
  %145 = vmatpush.msra.mxu0 0.0
  %146 = vmatpush.msra.mxu0 0.0
  %147 = vmatpush.msra.mxu0 0.0
  %148 = vmatpush.msra.mxu0 0.0
  %149 = vmatpush.msra.mxu0 0.0
  %150 = vmatpush.msra.mxu0 0.0
  %151 = vmatpush.msra.mxu0 0.0
  %152 = vmatpush.msra.mxu0 0.0
  %153 = vmatpush.msra.mxu0 0.0
  %154 = vmatpush.msra.mxu0 0.0
  %155 = vmatpush.msra.mxu0 0.0
  %156 = vmatpush.msra.mxu0 0.0
  %157 = vmatpush.msra.mxu0 0.0
  %158 = vmatpush.msra.mxu0 %v49
  %159 = vmatpush.msra.mxu0 %v48
  %160 = vmatmul.f32.gmra.mxu0 %v112
  %v161 = vpop.f32.mrf.mxu0
  %v162 = vadd.f32 %v61, %v161
  %163 = vmatmul.f32.gmra.mxu0 %v114
  %v164 = vpop.f32.mrf.mxu0
  %v165 = vadd.f32 %v61, %v164
  %166 = vmatmul.f32.gmra.mxu0 %v116
  %v167 = vpop.f32.mrf.mxu0
  %v168 = vadd.f32 %v61, %v167
  %169 = vmatmul.f32.gmra.mxu0 %v118
  %v170 = vpop.f32.mrf.mxu0
  %v171 = vadd.f32 %v61, %v170
  %172 = vmatmul.f32.gmra.mxu0 %v120
  %v173 = vpop.f32.mrf.mxu0
  %v174 = vadd.f32 %v61, %v173
  %175 = vmatmul.f32.gmra.mxu0 %v122
  %v176 = vpop.f32.mrf.mxu0
  %v177 = vadd.f32 %v61, %v176
  %178 = vmatmul.f32.gmra.mxu0 %v124
  %v179 = vpop.f32.mrf.mxu0
  %v180 = vadd.f32 %v61, %v179
  %181 = vmatmul.f32.gmra.mxu0 %v126
  %v182 = vpop.f32.mrf.mxu0
  %v183 = vadd.f32 %v61, %v182
  %184 = vmatmul.f32.gmra.mxu0 %v128
  %v185 = vpop.f32.mrf.mxu0
  %v186 = vadd.f32 %v61, %v185
  %187 = vmatmul.f32.gmra.mxu0 %v130
  %v188 = vpop.f32.mrf.mxu0
  %v189 = vadd.f32 %v61, %v188
  %190 = vmatmul.f32.gmra.mxu0 %v132
  %v191 = vpop.f32.mrf.mxu0
  %v192 = vadd.f32 %v61, %v191
  %193 = vmatmul.f32.gmra.mxu0 %v134
  %v194 = vpop.f32.mrf.mxu0
  %v195 = vadd.f32 %v61, %v194
  %196 = vmatmul.f32.gmra.mxu0 %v136
  %v197 = vpop.f32.mrf.mxu0
  %v198 = vadd.f32 %v61, %v197
  %199 = vmatmul.f32.gmra.mxu0 %v138
  %v200 = vpop.f32.mrf.mxu0
  %v201 = vadd.f32 %v61, %v200
  %202 = vmatmul.f32.gmra.mxu0 %v140
  %v203 = vpop.f32.mrf.mxu0
  %v204 = vadd.f32 %v61, %v203
  %205 = vmatmul.f32.gmra.mxu0 %v142
  %v206 = vpop.f32.mrf.mxu0
  %v207 = vadd.f32 %v61, %v206
  %208 = vdwg.mxu0
  %v209 = vmax.f32 %v162, 0.0
  %v210 = vmax.f32 %v165, 0.0
  %v211 = vmax.f32 %v168, 0.0
  %v212 = vmax.f32 %v171, 0.0
  %v213 = vmax.f32 %v174, 0.0
  %v214 = vmax.f32 %v177, 0.0
  %v215 = vmax.f32 %v180, 0.0
  %v216 = vmax.f32 %v183, 0.0
  %v217 = vmax.f32 %v186, 0.0
  %v218 = vmax.f32 %v189, 0.0
  %v219 = vmax.f32 %v192, 0.0
  %v220 = vmax.f32 %v195, 0.0
  %v221 = vmax.f32 %v198, 0.0
  %v222 = vmax.f32 %v201, 0.0
  %v223 = vmax.f32 %v204, 0.0
  %v224 = vmax.f32 %v207, 0.0
  %v226 = vperm.slane %v59, 0
  %vm228 = vcmask 523264
  %v230 = vsel %vm228, %v209, 0
  %v233 = vsel %vm228, %v210, 0
  %v236 = vsel %vm228, %v211, 0
  %v239 = vsel %vm228, %v212, 0
  %v242 = vsel %vm228, %v213, 0
  %v245 = vsel %vm228, %v214, 0
  %v248 = vsel %vm228, %v215, 0
  %v251 = vsel %vm228, %v216, 0
  %v254 = vsel %vm228, %v217, 0
  %v257 = vsel %vm228, %v218, 0
  %v260 = vsel %vm228, %v219, 0
  %v263 = vsel %vm228, %v220, 0
  %v266 = vsel %vm228, %v221, 0
  %v269 = vsel %vm228, %v222, 0
  %v272 = vsel %vm228, %v223, 0
  %v275 = vsel %vm228, %v224, 0
  %277 = vmatpush.msra.mxu0 0.0
  %278 = vmatpush.msra.mxu0 0.0
  %279 = vmatpush.msra.mxu0 0.0
  %280 = vmatpush.msra.mxu0 0.0
  %281 = vmatpush.msra.mxu0 0.0
  %282 = vmatpush.msra.mxu0 0.0
  %283 = vmatpush.msra.mxu0 0.0
  %284 = vmatpush.msra.mxu0 0.0
  %285 = vmatpush.msra.mxu0 %v58
  %286 = vmatpush.msra.mxu0 %v57
  %287 = vmatpush.msra.mxu0 %v56
  %288 = vmatpush.msra.mxu0 %v55
  %289 = vmatpush.msra.mxu0 %v54
  %290 = vmatpush.msra.mxu0 %v53
  %291 = vmatpush.msra.mxu0 %v52
  %292 = vmatpush.msra.mxu0 %v51
  %293 = vmatmul.f32.gmra.mxu0 %v230
  %v294 = vpop.f32.mrf.mxu0
  %v295 = vadd.f32 %v226, %v294
  %296 = vmatmul.f32.gmra.mxu0 %v233
  %v297 = vpop.f32.mrf.mxu0
  %v298 = vadd.f32 %v226, %v297
  %299 = vmatmul.f32.gmra.mxu0 %v236
  %v300 = vpop.f32.mrf.mxu0
  %v301 = vadd.f32 %v226, %v300
  %302 = vmatmul.f32.gmra.mxu0 %v239
  %v303 = vpop.f32.mrf.mxu0
  %v304 = vadd.f32 %v226, %v303
  %305 = vmatmul.f32.gmra.mxu0 %v242
  %v306 = vpop.f32.mrf.mxu0
  %v307 = vadd.f32 %v226, %v306
  %308 = vmatmul.f32.gmra.mxu0 %v245
  %v309 = vpop.f32.mrf.mxu0
  %v310 = vadd.f32 %v226, %v309
  %311 = vmatmul.f32.gmra.mxu0 %v248
  %v312 = vpop.f32.mrf.mxu0
  %v313 = vadd.f32 %v226, %v312
  %314 = vmatmul.f32.gmra.mxu0 %v251
  %v315 = vpop.f32.mrf.mxu0
  %v316 = vadd.f32 %v226, %v315
  %317 = vmatmul.f32.gmra.mxu0 %v254
  %v318 = vpop.f32.mrf.mxu0
  %v319 = vadd.f32 %v226, %v318
  %320 = vmatmul.f32.gmra.mxu0 %v257
  %v321 = vpop.f32.mrf.mxu0
  %v322 = vadd.f32 %v226, %v321
  %323 = vmatmul.f32.gmra.mxu0 %v260
  %v324 = vpop.f32.mrf.mxu0
  %v325 = vadd.f32 %v226, %v324
  %326 = vmatmul.f32.gmra.mxu0 %v263
  %v327 = vpop.f32.mrf.mxu0
  %v328 = vadd.f32 %v226, %v327
  %329 = vmatmul.f32.gmra.mxu0 %v266
  %v330 = vpop.f32.mrf.mxu0
  %v331 = vadd.f32 %v226, %v330
  %332 = vmatmul.f32.gmra.mxu0 %v269
  %v333 = vpop.f32.mrf.mxu0
  %v334 = vadd.f32 %v226, %v333
  %335 = vmatmul.f32.gmra.mxu0 %v272
  %v336 = vpop.f32.mrf.mxu0
  %v337 = vadd.f32 %v226, %v336
  %338 = vmatmul.f32.gmra.mxu0 %v275
  %v339 = vpop.f32.mrf.mxu0
  %v340 = vadd.f32 %v226, %v339
  %341 = vdwg.mxu0
  %v342 = vadd.f32 %v32, %v295
  %v343 = vadd.f32 %v33, %v298
  %v344 = vadd.f32 %v34, %v301
  %v345 = vadd.f32 %v35, %v304
  %v346 = vadd.f32 %v36, %v307
  %v347 = vadd.f32 %v37, %v310
  %v348 = vadd.f32 %v38, %v313
  %v349 = vadd.f32 %v39, %v316
  %v350 = vadd.f32 %v40, %v319
  %v351 = vadd.f32 %v41, %v322
  %v352 = vadd.f32 %v42, %v325
  %v353 = vadd.f32 %v43, %v328
  %v354 = vadd.f32 %v44, %v331
  %v355 = vadd.f32 %v45, %v334
  %v356 = vadd.f32 %v46, %v337
  %v357 = vadd.f32 %v47, %v340
  %v358 = vld [vmem:[%s5] sm:$0xff]
  %v359 = vld [vmem:[%s5 + $0x8] sm:$0xff]
  %v360 = vld [vmem:[%s6] sm:$0x1]
  %v361 = vld [vmem:[%s7] sm:$0xff]
  %v362 = vld [vmem:[%s7 + $0x8] sm:$0xff]
  %v363 = vld [vmem:[%s7 + $0x10] sm:$0xff]
  %v364 = vld [vmem:[%s7 + $0x18] sm:$0xff]
  %v365 = vld [vmem:[%s7 + $0x20] sm:$0xff]
  %v366 = vld [vmem:[%s7 + $0x28] sm:$0xff]
  %v367 = vld [vmem:[%s7 + $0x30] sm:$0xff]
  %v368 = vld [vmem:[%s7 + $0x38] sm:$0xff]
  %v369 = vld [vmem:[%s8] sm:$0x1]
  %v371 = vperm.slane %v360, 0
  %v374 = vsel %vm111, %v342, 0
  %v377 = vsel %vm111, %v343, 0
  %v380 = vsel %vm111, %v344, 0
  %v383 = vsel %vm111, %v345, 0
  %v386 = vsel %vm111, %v346, 0
  %v389 = vsel %vm111, %v347, 0
  %v392 = vsel %vm111, %v348, 0
  %v395 = vsel %vm111, %v349, 0
  %v398 = vsel %vm111, %v350, 0
  %v401 = vsel %vm111, %v351, 0
  %v404 = vsel %vm111, %v352, 0
  %v407 = vsel %vm111, %v353, 0
  %v410 = vsel %vm111, %v354, 0
  %v413 = vsel %vm111, %v355, 0
  %v416 = vsel %vm111, %v356, 0
  %v419 = vsel %vm111, %v357, 0
  %421 = vmatpush.msra.mxu0 0.0
  %422 = vmatpush.msra.mxu0 0.0
  %423 = vmatpush.msra.mxu0 0.0
  %424 = vmatpush.msra.mxu0 0.0
  %425 = vmatpush.msra.mxu0 0.0
  %426 = vmatpush.msra.mxu0 0.0
  %427 = vmatpush.msra.mxu0 0.0
  %428 = vmatpush.msra.mxu0 0.0
  %429 = vmatpush.msra.mxu0 0.0
  %430 = vmatpush.msra.mxu0 0.0
  %431 = vmatpush.msra.mxu0 0.0
  %432 = vmatpush.msra.mxu0 0.0
  %433 = vmatpush.msra.mxu0 0.0
  %434 = vmatpush.msra.mxu0 0.0
  %435 = vmatpush.msra.mxu0 %v359
  %436 = vmatpush.msra.mxu0 %v358
  %437 = vmatmul.f32.gmra.mxu0 %v374
  %v438 = vpop.f32.mrf.mxu0
  %v439 = vadd.f32 %v371, %v438
  %440 = vmatmul.f32.gmra.mxu0 %v377
  %v441 = vpop.f32.mrf.mxu0
  %v442 = vadd.f32 %v371, %v441
  %443 = vmatmul.f32.gmra.mxu0 %v380
  %v444 = vpop.f32.mrf.mxu0
  %v445 = vadd.f32 %v371, %v444
  %446 = vmatmul.f32.gmra.mxu0 %v383
  %v447 = vpop.f32.mrf.mxu0
  %v448 = vadd.f32 %v371, %v447
  %449 = vmatmul.f32.gmra.mxu0 %v386
  %v450 = vpop.f32.mrf.mxu0
  %v451 = vadd.f32 %v371, %v450
  %452 = vmatmul.f32.gmra.mxu0 %v389
  %v453 = vpop.f32.mrf.mxu0
  %v454 = vadd.f32 %v371, %v453
  %455 = vmatmul.f32.gmra.mxu0 %v392
  %v456 = vpop.f32.mrf.mxu0
  %v457 = vadd.f32 %v371, %v456
  %458 = vmatmul.f32.gmra.mxu0 %v395
  %v459 = vpop.f32.mrf.mxu0
  %v460 = vadd.f32 %v371, %v459
  %461 = vmatmul.f32.gmra.mxu0 %v398
  %v462 = vpop.f32.mrf.mxu0
  %v463 = vadd.f32 %v371, %v462
  %464 = vmatmul.f32.gmra.mxu0 %v401
  %v465 = vpop.f32.mrf.mxu0
  %v466 = vadd.f32 %v371, %v465
  %467 = vmatmul.f32.gmra.mxu0 %v404
  %v468 = vpop.f32.mrf.mxu0
  %v469 = vadd.f32 %v371, %v468
  %470 = vmatmul.f32.gmra.mxu0 %v407
  %v471 = vpop.f32.mrf.mxu0
  %v472 = vadd.f32 %v371, %v471
  %473 = vmatmul.f32.gmra.mxu0 %v410
  %v474 = vpop.f32.mrf.mxu0
  %v475 = vadd.f32 %v371, %v474
  %476 = vmatmul.f32.gmra.mxu0 %v413
  %v477 = vpop.f32.mrf.mxu0
  %v478 = vadd.f32 %v371, %v477
  %479 = vmatmul.f32.gmra.mxu0 %v416
  %v480 = vpop.f32.mrf.mxu0
  %v481 = vadd.f32 %v371, %v480
  %482 = vmatmul.f32.gmra.mxu0 %v419
  %v483 = vpop.f32.mrf.mxu0
  %v484 = vadd.f32 %v371, %v483
  %485 = vdwg.mxu0
  %v486 = vmax.f32 %v439, 0.0
  %v487 = vmax.f32 %v442, 0.0
  %v488 = vmax.f32 %v445, 0.0
  %v489 = vmax.f32 %v448, 0.0
  %v490 = vmax.f32 %v451, 0.0
  %v491 = vmax.f32 %v454, 0.0
  %v492 = vmax.f32 %v457, 0.0
  %v493 = vmax.f32 %v460, 0.0
  %v494 = vmax.f32 %v463, 0.0
  %v495 = vmax.f32 %v466, 0.0
  %v496 = vmax.f32 %v469, 0.0
  %v497 = vmax.f32 %v472, 0.0
  %v498 = vmax.f32 %v475, 0.0
  %v499 = vmax.f32 %v478, 0.0
  %v500 = vmax.f32 %v481, 0.0
  %v501 = vmax.f32 %v484, 0.0
  %v503 = vperm.slane %v369, 0
  %v506 = vsel %vm228, %v486, 0
  %v509 = vsel %vm228, %v487, 0
  %v512 = vsel %vm228, %v488, 0
  %v515 = vsel %vm228, %v489, 0
  %v518 = vsel %vm228, %v490, 0
  %v521 = vsel %vm228, %v491, 0
  %v524 = vsel %vm228, %v492, 0
  %v527 = vsel %vm228, %v493, 0
  %v530 = vsel %vm228, %v494, 0
  %v533 = vsel %vm228, %v495, 0
  %v536 = vsel %vm228, %v496, 0
  %v539 = vsel %vm228, %v497, 0
  %v542 = vsel %vm228, %v498, 0
  %v545 = vsel %vm228, %v499, 0
  %v548 = vsel %vm228, %v500, 0
  %v551 = vsel %vm228, %v501, 0
  %553 = vmatpush.msra.mxu0 0.0
  %554 = vmatpush.msra.mxu0 0.0
  %555 = vmatpush.msra.mxu0 0.0
  %556 = vmatpush.msra.mxu0 0.0
  %557 = vmatpush.msra.mxu0 0.0
  %558 = vmatpush.msra.mxu0 0.0
  %559 = vmatpush.msra.mxu0 0.0
  %560 = vmatpush.msra.mxu0 0.0
  %561 = vmatpush.msra.mxu0 %v368
  %562 = vmatpush.msra.mxu0 %v367
  %563 = vmatpush.msra.mxu0 %v366
  %564 = vmatpush.msra.mxu0 %v365
  %565 = vmatpush.msra.mxu0 %v364
  %566 = vmatpush.msra.mxu0 %v363
  %567 = vmatpush.msra.mxu0 %v362
  %568 = vmatpush.msra.mxu0 %v361
  %569 = vmatmul.f32.gmra.mxu0 %v506
  %v570 = vpop.f32.mrf.mxu0
  %v571 = vadd.f32 %v503, %v570
  %572 = vmatmul.f32.gmra.mxu0 %v509
  %v573 = vpop.f32.mrf.mxu0
  %v574 = vadd.f32 %v503, %v573
  %575 = vmatmul.f32.gmra.mxu0 %v512
  %v576 = vpop.f32.mrf.mxu0
  %v577 = vadd.f32 %v503, %v576
  %578 = vmatmul.f32.gmra.mxu0 %v515
  %v579 = vpop.f32.mrf.mxu0
  %v580 = vadd.f32 %v503, %v579
  %581 = vmatmul.f32.gmra.mxu0 %v518
  %v582 = vpop.f32.mrf.mxu0
  %v583 = vadd.f32 %v503, %v582
  %584 = vmatmul.f32.gmra.mxu0 %v521
  %v585 = vpop.f32.mrf.mxu0
  %v586 = vadd.f32 %v503, %v585
  %587 = vmatmul.f32.gmra.mxu0 %v524
  %v588 = vpop.f32.mrf.mxu0
  %v589 = vadd.f32 %v503, %v588
  %590 = vmatmul.f32.gmra.mxu0 %v527
  %v591 = vpop.f32.mrf.mxu0
  %v592 = vadd.f32 %v503, %v591
  %593 = vmatmul.f32.gmra.mxu0 %v530
  %v594 = vpop.f32.mrf.mxu0
  %v595 = vadd.f32 %v503, %v594
  %596 = vmatmul.f32.gmra.mxu0 %v533
  %v597 = vpop.f32.mrf.mxu0
  %v598 = vadd.f32 %v503, %v597
  %599 = vmatmul.f32.gmra.mxu0 %v536
  %v600 = vpop.f32.mrf.mxu0
  %v601 = vadd.f32 %v503, %v600
  %602 = vmatmul.f32.gmra.mxu0 %v539
  %v603 = vpop.f32.mrf.mxu0
  %v604 = vadd.f32 %v503, %v603
  %605 = vmatmul.f32.gmra.mxu0 %v542
  %v606 = vpop.f32.mrf.mxu0
  %v607 = vadd.f32 %v503, %v606
  %608 = vmatmul.f32.gmra.mxu0 %v545
  %v609 = vpop.f32.mrf.mxu0
  %v610 = vadd.f32 %v503, %v609
  %611 = vmatmul.f32.gmra.mxu0 %v548
  %v612 = vpop.f32.mrf.mxu0
  %v613 = vadd.f32 %v503, %v612
  %614 = vmatmul.f32.gmra.mxu0 %v551
  %v615 = vpop.f32.mrf.mxu0
  %v616 = vadd.f32 %v503, %v615
  %617 = vdwg.mxu0
  %634 = vrot.lane.b32.xlu0 %v571, 16
  %v635 = vpop.permute.xlu0 %634
  %636 = vrot.lane.b32.xlu0 %v574, 16
  %v637 = vpop.permute.xlu0 %636
  %638 = vrot.lane.b32.xlu0 %v577, 16
  %v639 = vpop.permute.xlu0 %638
  %640 = vrot.lane.b32.xlu0 %v580, 16
  %v641 = vpop.permute.xlu0 %640
  %642 = vrot.lane.b32.xlu0 %v583, 16
  %v643 = vpop.permute.xlu0 %642
  %644 = vrot.lane.b32.xlu0 %v586, 16
  %v645 = vpop.permute.xlu0 %644
  %646 = vrot.lane.b32.xlu0 %v589, 16
  %v647 = vpop.permute.xlu0 %646
  %648 = vrot.lane.b32.xlu0 %v592, 16
  %v649 = vpop.permute.xlu0 %648
  %650 = vrot.lane.b32.xlu0 %v595, 16
  %v651 = vpop.permute.xlu0 %650
  %652 = vrot.lane.b32.xlu0 %v598, 16
  %v653 = vpop.permute.xlu0 %652
  %654 = vrot.lane.b32.xlu0 %v601, 16
  %v655 = vpop.permute.xlu0 %654
  %656 = vrot.lane.b32.xlu0 %v604, 16
  %v657 = vpop.permute.xlu0 %656
  %658 = vrot.lane.b32.xlu0 %v607, 16
  %v659 = vpop.permute.xlu0 %658
  %660 = vrot.lane.b32.xlu0 %v610, 16
  %v661 = vpop.permute.xlu0 %660
  %662 = vrot.lane.b32.xlu0 %v613, 16
  %v663 = vpop.permute.xlu0 %662
  %664 = vrot.lane.b32.xlu0 %v616, 16
  %v665 = vpop.permute.xlu0 %664
  %v682 = vadd.f32 %v32, %v635
  %v683 = vadd.f32 %v33, %v637
  %v684 = vadd.f32 %v34, %v639
  %v685 = vadd.f32 %v35, %v641
  %v686 = vadd.f32 %v36, %v643
  %v687 = vadd.f32 %v37, %v645
  %v688 = vadd.f32 %v38, %v647
  %v689 = vadd.f32 %v39, %v649
  %v690 = vadd.f32 %v40, %v651
  %v691 = vadd.f32 %v41, %v653
  %v692 = vadd.f32 %v42, %v655
  %v693 = vadd.f32 %v43, %v657
  %v694 = vadd.f32 %v44, %v659
  %v695 = vadd.f32 %v45, %v661
  %v696 = vadd.f32 %v46, %v663
  %v697 = vadd.f32 %v47, %v665
  %s698 = scalar_lea.vmem %s1, 16
  %v699 = vld [vmem:[%s698] sm:$0xff]
  %v700 = vld [vmem:[%s698 + $0x8] sm:$0xff]
  %s701 = scalar_lea.vmem %s2, 1
  %v702 = vld [vmem:[%s701] sm:$0x1]
  %s703 = scalar_lea.vmem %s3, 64
  %v704 = vld [vmem:[%s703] sm:$0xff]
  %v705 = vld [vmem:[%s703 + $0x8] sm:$0xff]
  %v706 = vld [vmem:[%s703 + $0x10] sm:$0xff]
  %v707 = vld [vmem:[%s703 + $0x18] sm:$0xff]
  %v708 = vld [vmem:[%s703 + $0x20] sm:$0xff]
  %v709 = vld [vmem:[%s703 + $0x28] sm:$0xff]
  %v710 = vld [vmem:[%s703 + $0x30] sm:$0xff]
  %v711 = vld [vmem:[%s703 + $0x38] sm:$0xff]
  %s712 = scalar_lea.vmem %s4, 1
  %v713 = vld [vmem:[%s712] sm:$0x1]
  %v715 = vperm.slane %v702, 0
  %733 = vrot.lane.b32.xlu0 %v682, 112
  %v734 = vpop.permute.xlu0 %733
  %735 = vrot.lane.b32.xlu0 %v683, 112
  %v736 = vpop.permute.xlu0 %735
  %737 = vrot.lane.b32.xlu0 %v684, 112
  %v738 = vpop.permute.xlu0 %737
  %739 = vrot.lane.b32.xlu0 %v685, 112
  %v740 = vpop.permute.xlu0 %739
  %741 = vrot.lane.b32.xlu0 %v686, 112
  %v742 = vpop.permute.xlu0 %741
  %743 = vrot.lane.b32.xlu0 %v687, 112
  %v744 = vpop.permute.xlu0 %743
  %745 = vrot.lane.b32.xlu0 %v688, 112
  %v746 = vpop.permute.xlu0 %745
  %747 = vrot.lane.b32.xlu0 %v689, 112
  %v748 = vpop.permute.xlu0 %747
  %749 = vrot.lane.b32.xlu0 %v690, 112
  %v750 = vpop.permute.xlu0 %749
  %751 = vrot.lane.b32.xlu0 %v691, 112
  %v752 = vpop.permute.xlu0 %751
  %753 = vrot.lane.b32.xlu0 %v692, 112
  %v754 = vpop.permute.xlu0 %753
  %755 = vrot.lane.b32.xlu0 %v693, 112
  %v756 = vpop.permute.xlu0 %755
  %757 = vrot.lane.b32.xlu0 %v694, 112
  %v758 = vpop.permute.xlu0 %757
  %759 = vrot.lane.b32.xlu0 %v695, 112
  %v760 = vpop.permute.xlu0 %759
  %761 = vrot.lane.b32.xlu0 %v696, 112
  %v762 = vpop.permute.xlu0 %761
  %763 = vrot.lane.b32.xlu0 %v697, 112
  %v764 = vpop.permute.xlu0 %763
  %v765 = vsel %vm111, %v734, 0
  %v767 = vsel %vm111, %v736, 0
  %v769 = vsel %vm111, %v738, 0
  %v771 = vsel %vm111, %v740, 0
  %v773 = vsel %vm111, %v742, 0
  %v775 = vsel %vm111, %v744, 0
  %v777 = vsel %vm111, %v746, 0
  %v779 = vsel %vm111, %v748, 0
  %v781 = vsel %vm111, %v750, 0
  %v783 = vsel %vm111, %v752, 0
  %v785 = vsel %vm111, %v754, 0
  %v787 = vsel %vm111, %v756, 0
  %v789 = vsel %vm111, %v758, 0
  %v791 = vsel %vm111, %v760, 0
  %v793 = vsel %vm111, %v762, 0
  %v795 = vsel %vm111, %v764, 0
  %797 = vmatpush.msra.mxu0 0.0
  %798 = vmatpush.msra.mxu0 0.0
  %799 = vmatpush.msra.mxu0 0.0
  %800 = vmatpush.msra.mxu0 0.0
  %801 = vmatpush.msra.mxu0 0.0
  %802 = vmatpush.msra.mxu0 0.0
  %803 = vmatpush.msra.mxu0 0.0
  %804 = vmatpush.msra.mxu0 0.0
  %805 = vmatpush.msra.mxu0 0.0
  %806 = vmatpush.msra.mxu0 0.0
  %807 = vmatpush.msra.mxu0 0.0
  %808 = vmatpush.msra.mxu0 0.0
  %809 = vmatpush.msra.mxu0 0.0
  %810 = vmatpush.msra.mxu0 0.0
  %811 = vmatpush.msra.mxu0 %v700
  %812 = vmatpush.msra.mxu0 %v699
  %813 = vmatmul.f32.gmra.mxu0 %v765
  %v814 = vpop.f32.mrf.mxu0
  %v815 = vadd.f32 %v715, %v814
  %816 = vmatmul.f32.gmra.mxu0 %v767
  %v817 = vpop.f32.mrf.mxu0
  %v818 = vadd.f32 %v715, %v817
  %819 = vmatmul.f32.gmra.mxu0 %v769
  %v820 = vpop.f32.mrf.mxu0
  %v821 = vadd.f32 %v715, %v820
  %822 = vmatmul.f32.gmra.mxu0 %v771
  %v823 = vpop.f32.mrf.mxu0
  %v824 = vadd.f32 %v715, %v823
  %825 = vmatmul.f32.gmra.mxu0 %v773
  %v826 = vpop.f32.mrf.mxu0
  %v827 = vadd.f32 %v715, %v826
  %828 = vmatmul.f32.gmra.mxu0 %v775
  %v829 = vpop.f32.mrf.mxu0
  %v830 = vadd.f32 %v715, %v829
  %831 = vmatmul.f32.gmra.mxu0 %v777
  %v832 = vpop.f32.mrf.mxu0
  %v833 = vadd.f32 %v715, %v832
  %834 = vmatmul.f32.gmra.mxu0 %v779
  %v835 = vpop.f32.mrf.mxu0
  %v836 = vadd.f32 %v715, %v835
  %837 = vmatmul.f32.gmra.mxu0 %v781
  %v838 = vpop.f32.mrf.mxu0
  %v839 = vadd.f32 %v715, %v838
  %840 = vmatmul.f32.gmra.mxu0 %v783
  %v841 = vpop.f32.mrf.mxu0
  %v842 = vadd.f32 %v715, %v841
  %843 = vmatmul.f32.gmra.mxu0 %v785
  %v844 = vpop.f32.mrf.mxu0
  %v845 = vadd.f32 %v715, %v844
  %846 = vmatmul.f32.gmra.mxu0 %v787
  %v847 = vpop.f32.mrf.mxu0
  %v848 = vadd.f32 %v715, %v847
  %849 = vmatmul.f32.gmra.mxu0 %v789
  %v850 = vpop.f32.mrf.mxu0
  %v851 = vadd.f32 %v715, %v850
  %852 = vmatmul.f32.gmra.mxu0 %v791
  %v853 = vpop.f32.mrf.mxu0
  %v854 = vadd.f32 %v715, %v853
  %855 = vmatmul.f32.gmra.mxu0 %v793
  %v856 = vpop.f32.mrf.mxu0
  %v857 = vadd.f32 %v715, %v856
  %858 = vmatmul.f32.gmra.mxu0 %v795
  %v859 = vpop.f32.mrf.mxu0
  %v860 = vadd.f32 %v715, %v859
  %861 = vdwg.mxu0
  %v862 = vmax.f32 %v815, 0.0
  %v863 = vmax.f32 %v818, 0.0
  %v864 = vmax.f32 %v821, 0.0
  %v865 = vmax.f32 %v824, 0.0
  %v866 = vmax.f32 %v827, 0.0
  %v867 = vmax.f32 %v830, 0.0
  %v868 = vmax.f32 %v833, 0.0
  %v869 = vmax.f32 %v836, 0.0
  %v870 = vmax.f32 %v839, 0.0
  %v871 = vmax.f32 %v842, 0.0
  %v872 = vmax.f32 %v845, 0.0
  %v873 = vmax.f32 %v848, 0.0
  %v874 = vmax.f32 %v851, 0.0
  %v875 = vmax.f32 %v854, 0.0
  %v876 = vmax.f32 %v857, 0.0
  %v877 = vmax.f32 %v860, 0.0
  %v879 = vperm.slane %v713, 0
  %v882 = vsel %vm228, %v862, 0
  %v885 = vsel %vm228, %v863, 0
  %v888 = vsel %vm228, %v864, 0
  %v891 = vsel %vm228, %v865, 0
  %v894 = vsel %vm228, %v866, 0
  %v897 = vsel %vm228, %v867, 0
  %v900 = vsel %vm228, %v868, 0
  %v903 = vsel %vm228, %v869, 0
  %v906 = vsel %vm228, %v870, 0
  %v909 = vsel %vm228, %v871, 0
  %v912 = vsel %vm228, %v872, 0
  %v915 = vsel %vm228, %v873, 0
  %v918 = vsel %vm228, %v874, 0
  %v921 = vsel %vm228, %v875, 0
  %v924 = vsel %vm228, %v876, 0
  %v927 = vsel %vm228, %v877, 0
  %929 = vmatpush.msra.mxu0 0.0
  %930 = vmatpush.msra.mxu0 0.0
  %931 = vmatpush.msra.mxu0 0.0
  %932 = vmatpush.msra.mxu0 0.0
  %933 = vmatpush.msra.mxu0 0.0
  %934 = vmatpush.msra.mxu0 0.0
  %935 = vmatpush.msra.mxu0 0.0
  %936 = vmatpush.msra.mxu0 0.0
  %937 = vmatpush.msra.mxu0 %v711
  %938 = vmatpush.msra.mxu0 %v710
  %939 = vmatpush.msra.mxu0 %v709
  %940 = vmatpush.msra.mxu0 %v708
  %941 = vmatpush.msra.mxu0 %v707
  %942 = vmatpush.msra.mxu0 %v706
  %943 = vmatpush.msra.mxu0 %v705
  %944 = vmatpush.msra.mxu0 %v704
  %945 = vmatmul.f32.gmra.mxu0 %v882
  %v946 = vpop.f32.mrf.mxu0
  %v947 = vadd.f32 %v879, %v946
  %948 = vmatmul.f32.gmra.mxu0 %v885
  %v949 = vpop.f32.mrf.mxu0
  %v950 = vadd.f32 %v879, %v949
  %951 = vmatmul.f32.gmra.mxu0 %v888
  %v952 = vpop.f32.mrf.mxu0
  %v953 = vadd.f32 %v879, %v952
  %954 = vmatmul.f32.gmra.mxu0 %v891
  %v955 = vpop.f32.mrf.mxu0
  %v956 = vadd.f32 %v879, %v955
  %957 = vmatmul.f32.gmra.mxu0 %v894
  %v958 = vpop.f32.mrf.mxu0
  %v959 = vadd.f32 %v879, %v958
  %960 = vmatmul.f32.gmra.mxu0 %v897
  %v961 = vpop.f32.mrf.mxu0
  %v962 = vadd.f32 %v879, %v961
  %963 = vmatmul.f32.gmra.mxu0 %v900
  %v964 = vpop.f32.mrf.mxu0
  %v965 = vadd.f32 %v879, %v964
  %966 = vmatmul.f32.gmra.mxu0 %v903
  %v967 = vpop.f32.mrf.mxu0
  %v968 = vadd.f32 %v879, %v967
  %969 = vmatmul.f32.gmra.mxu0 %v906
  %v970 = vpop.f32.mrf.mxu0
  %v971 = vadd.f32 %v879, %v970
  %972 = vmatmul.f32.gmra.mxu0 %v909
  %v973 = vpop.f32.mrf.mxu0
  %v974 = vadd.f32 %v879, %v973
  %975 = vmatmul.f32.gmra.mxu0 %v912
  %v976 = vpop.f32.mrf.mxu0
  %v977 = vadd.f32 %v879, %v976
  %978 = vmatmul.f32.gmra.mxu0 %v915
  %v979 = vpop.f32.mrf.mxu0
  %v980 = vadd.f32 %v879, %v979
  %981 = vmatmul.f32.gmra.mxu0 %v918
  %v982 = vpop.f32.mrf.mxu0
  %v983 = vadd.f32 %v879, %v982
  %984 = vmatmul.f32.gmra.mxu0 %v921
  %v985 = vpop.f32.mrf.mxu0
  %v986 = vadd.f32 %v879, %v985
  %987 = vmatmul.f32.gmra.mxu0 %v924
  %v988 = vpop.f32.mrf.mxu0
  %v989 = vadd.f32 %v879, %v988
  %990 = vmatmul.f32.gmra.mxu0 %v927
  %v991 = vpop.f32.mrf.mxu0
  %v992 = vadd.f32 %v879, %v991
  %993 = vdwg.mxu0
  %v994 = vadd.f32 %v342, %v947
  %v995 = vadd.f32 %v343, %v950
  %v996 = vadd.f32 %v344, %v953
  %v997 = vadd.f32 %v345, %v956
  %v998 = vadd.f32 %v346, %v959
  %v999 = vadd.f32 %v347, %v962
  %v1000 = vadd.f32 %v348, %v965
  %v1001 = vadd.f32 %v349, %v968
  %v1002 = vadd.f32 %v350, %v971
  %v1003 = vadd.f32 %v351, %v974
  %v1004 = vadd.f32 %v352, %v977
  %v1005 = vadd.f32 %v353, %v980
  %v1006 = vadd.f32 %v354, %v983
  %v1007 = vadd.f32 %v355, %v986
  %v1008 = vadd.f32 %v356, %v989
  %v1009 = vadd.f32 %v357, %v992
  %s1010 = scalar_lea.vmem %s5, 16
  %v1011 = vld [vmem:[%s1010] sm:$0xff]
  %v1012 = vld [vmem:[%s1010 + $0x8] sm:$0xff]
  %s1013 = scalar_lea.vmem %s6, 1
  %v1014 = vld [vmem:[%s1013] sm:$0x1]
  %s1015 = scalar_lea.vmem %s7, 64
  %v1016 = vld [vmem:[%s1015] sm:$0xff]
  %v1017 = vld [vmem:[%s1015 + $0x8] sm:$0xff]
  %v1018 = vld [vmem:[%s1015 + $0x10] sm:$0xff]
  %v1019 = vld [vmem:[%s1015 + $0x18] sm:$0xff]
  %v1020 = vld [vmem:[%s1015 + $0x20] sm:$0xff]
  %v1021 = vld [vmem:[%s1015 + $0x28] sm:$0xff]
  %v1022 = vld [vmem:[%s1015 + $0x30] sm:$0xff]
  %v1023 = vld [vmem:[%s1015 + $0x38] sm:$0xff]
  %s1024 = scalar_lea.vmem %s8, 1
  %v1025 = vld [vmem:[%s1024] sm:$0x1]
  %v1027 = vperm.slane %v1014, 0
  %v1030 = vsel %vm111, %v994, 0
  %v1033 = vsel %vm111, %v995, 0
  %v1036 = vsel %vm111, %v996, 0
  %v1039 = vsel %vm111, %v997, 0
  %v1042 = vsel %vm111, %v998, 0
  %v1045 = vsel %vm111, %v999, 0
  %v1048 = vsel %vm111, %v1000, 0
  %v1051 = vsel %vm111, %v1001, 0
  %v1054 = vsel %vm111, %v1002, 0
  %v1057 = vsel %vm111, %v1003, 0
  %v1060 = vsel %vm111, %v1004, 0
  %v1063 = vsel %vm111, %v1005, 0
  %v1066 = vsel %vm111, %v1006, 0
  %v1069 = vsel %vm111, %v1007, 0
  %v1072 = vsel %vm111, %v1008, 0
  %v1075 = vsel %vm111, %v1009, 0
  %1077 = vmatpush.msra.mxu0 0.0
  %1078 = vmatpush.msra.mxu0 0.0
  %1079 = vmatpush.msra.mxu0 0.0
  %1080 = vmatpush.msra.mxu0 0.0
  %1081 = vmatpush.msra.mxu0 0.0
  %1082 = vmatpush.msra.mxu0 0.0
  %1083 = vmatpush.msra.mxu0 0.0
  %1084 = vmatpush.msra.mxu0 0.0
  %1085 = vmatpush.msra.mxu0 0.0
  %1086 = vmatpush.msra.mxu0 0.0
  %1087 = vmatpush.msra.mxu0 0.0
  %1088 = vmatpush.msra.mxu0 0.0
  %1089 = vmatpush.msra.mxu0 0.0
  %1090 = vmatpush.msra.mxu0 0.0
  %1091 = vmatpush.msra.mxu0 %v1012
  %1092 = vmatpush.msra.mxu0 %v1011
  %1093 = vmatmul.f32.gmra.mxu0 %v1030
  %v1094 = vpop.f32.mrf.mxu0
  %v1095 = vadd.f32 %v1027, %v1094
  %1096 = vmatmul.f32.gmra.mxu0 %v1033
  %v1097 = vpop.f32.mrf.mxu0
  %v1098 = vadd.f32 %v1027, %v1097
  %1099 = vmatmul.f32.gmra.mxu0 %v1036
  %v1100 = vpop.f32.mrf.mxu0
  %v1101 = vadd.f32 %v1027, %v1100
  %1102 = vmatmul.f32.gmra.mxu0 %v1039
  %v1103 = vpop.f32.mrf.mxu0
  %v1104 = vadd.f32 %v1027, %v1103
  %1105 = vmatmul.f32.gmra.mxu0 %v1042
  %v1106 = vpop.f32.mrf.mxu0
  %v1107 = vadd.f32 %v1027, %v1106
  %1108 = vmatmul.f32.gmra.mxu0 %v1045
  %v1109 = vpop.f32.mrf.mxu0
  %v1110 = vadd.f32 %v1027, %v1109
  %1111 = vmatmul.f32.gmra.mxu0 %v1048
  %v1112 = vpop.f32.mrf.mxu0
  %v1113 = vadd.f32 %v1027, %v1112
  %1114 = vmatmul.f32.gmra.mxu0 %v1051
  %v1115 = vpop.f32.mrf.mxu0
  %v1116 = vadd.f32 %v1027, %v1115
  %1117 = vmatmul.f32.gmra.mxu0 %v1054
  %v1118 = vpop.f32.mrf.mxu0
  %v1119 = vadd.f32 %v1027, %v1118
  %1120 = vmatmul.f32.gmra.mxu0 %v1057
  %v1121 = vpop.f32.mrf.mxu0
  %v1122 = vadd.f32 %v1027, %v1121
  %1123 = vmatmul.f32.gmra.mxu0 %v1060
  %v1124 = vpop.f32.mrf.mxu0
  %v1125 = vadd.f32 %v1027, %v1124
  %1126 = vmatmul.f32.gmra.mxu0 %v1063
  %v1127 = vpop.f32.mrf.mxu0
  %v1128 = vadd.f32 %v1027, %v1127
  %1129 = vmatmul.f32.gmra.mxu0 %v1066
  %v1130 = vpop.f32.mrf.mxu0
  %v1131 = vadd.f32 %v1027, %v1130
  %1132 = vmatmul.f32.gmra.mxu0 %v1069
  %v1133 = vpop.f32.mrf.mxu0
  %v1134 = vadd.f32 %v1027, %v1133
  %1135 = vmatmul.f32.gmra.mxu0 %v1072
  %v1136 = vpop.f32.mrf.mxu0
  %v1137 = vadd.f32 %v1027, %v1136
  %1138 = vmatmul.f32.gmra.mxu0 %v1075
  %v1139 = vpop.f32.mrf.mxu0
  %v1140 = vadd.f32 %v1027, %v1139
  %1141 = vdwg.mxu0
  %v1142 = vmax.f32 %v1095, 0.0
  %v1143 = vmax.f32 %v1098, 0.0
  %v1144 = vmax.f32 %v1101, 0.0
  %v1145 = vmax.f32 %v1104, 0.0
  %v1146 = vmax.f32 %v1107, 0.0
  %v1147 = vmax.f32 %v1110, 0.0
  %v1148 = vmax.f32 %v1113, 0.0
  %v1149 = vmax.f32 %v1116, 0.0
  %v1150 = vmax.f32 %v1119, 0.0
  %v1151 = vmax.f32 %v1122, 0.0
  %v1152 = vmax.f32 %v1125, 0.0
  %v1153 = vmax.f32 %v1128, 0.0
  %v1154 = vmax.f32 %v1131, 0.0
  %v1155 = vmax.f32 %v1134, 0.0
  %v1156 = vmax.f32 %v1137, 0.0
  %v1157 = vmax.f32 %v1140, 0.0
  %v1159 = vperm.slane %v1025, 0
  %v1162 = vsel %vm228, %v1142, 0
  %v1165 = vsel %vm228, %v1143, 0
  %v1168 = vsel %vm228, %v1144, 0
  %v1171 = vsel %vm228, %v1145, 0
  %v1174 = vsel %vm228, %v1146, 0
  %v1177 = vsel %vm228, %v1147, 0
  %v1180 = vsel %vm228, %v1148, 0
  %v1183 = vsel %vm228, %v1149, 0
  %v1186 = vsel %vm228, %v1150, 0
  %v1189 = vsel %vm228, %v1151, 0
  %v1192 = vsel %vm228, %v1152, 0
  %v1195 = vsel %vm228, %v1153, 0
  %v1198 = vsel %vm228, %v1154, 0
  %v1201 = vsel %vm228, %v1155, 0
  %v1204 = vsel %vm228, %v1156, 0
  %v1207 = vsel %vm228, %v1157, 0
  %1209 = vmatpush.msra.mxu0 0.0
  %1210 = vmatpush.msra.mxu0 0.0
  %1211 = vmatpush.msra.mxu0 0.0
  %1212 = vmatpush.msra.mxu0 0.0
  %1213 = vmatpush.msra.mxu0 0.0
  %1214 = vmatpush.msra.mxu0 0.0
  %1215 = vmatpush.msra.mxu0 0.0
  %1216 = vmatpush.msra.mxu0 0.0
  %1217 = vmatpush.msra.mxu0 %v1023
  %1218 = vmatpush.msra.mxu0 %v1022
  %1219 = vmatpush.msra.mxu0 %v1021
  %1220 = vmatpush.msra.mxu0 %v1020
  %1221 = vmatpush.msra.mxu0 %v1019
  %1222 = vmatpush.msra.mxu0 %v1018
  %1223 = vmatpush.msra.mxu0 %v1017
  %1224 = vmatpush.msra.mxu0 %v1016
  %1225 = vmatmul.f32.gmra.mxu0 %v1162
  %v1226 = vpop.f32.mrf.mxu0
  %v1227 = vadd.f32 %v1159, %v1226
  %1228 = vmatmul.f32.gmra.mxu0 %v1165
  %v1229 = vpop.f32.mrf.mxu0
  %v1230 = vadd.f32 %v1159, %v1229
  %1231 = vmatmul.f32.gmra.mxu0 %v1168
  %v1232 = vpop.f32.mrf.mxu0
  %v1233 = vadd.f32 %v1159, %v1232
  %1234 = vmatmul.f32.gmra.mxu0 %v1171
  %v1235 = vpop.f32.mrf.mxu0
  %v1236 = vadd.f32 %v1159, %v1235
  %1237 = vmatmul.f32.gmra.mxu0 %v1174
  %v1238 = vpop.f32.mrf.mxu0
  %v1239 = vadd.f32 %v1159, %v1238
  %1240 = vmatmul.f32.gmra.mxu0 %v1177
  %v1241 = vpop.f32.mrf.mxu0
  %v1242 = vadd.f32 %v1159, %v1241
  %1243 = vmatmul.f32.gmra.mxu0 %v1180
  %v1244 = vpop.f32.mrf.mxu0
  %v1245 = vadd.f32 %v1159, %v1244
  %1246 = vmatmul.f32.gmra.mxu0 %v1183
  %v1247 = vpop.f32.mrf.mxu0
  %v1248 = vadd.f32 %v1159, %v1247
  %1249 = vmatmul.f32.gmra.mxu0 %v1186
  %v1250 = vpop.f32.mrf.mxu0
  %v1251 = vadd.f32 %v1159, %v1250
  %1252 = vmatmul.f32.gmra.mxu0 %v1189
  %v1253 = vpop.f32.mrf.mxu0
  %v1254 = vadd.f32 %v1159, %v1253
  %1255 = vmatmul.f32.gmra.mxu0 %v1192
  %v1256 = vpop.f32.mrf.mxu0
  %v1257 = vadd.f32 %v1159, %v1256
  %1258 = vmatmul.f32.gmra.mxu0 %v1195
  %v1259 = vpop.f32.mrf.mxu0
  %v1260 = vadd.f32 %v1159, %v1259
  %1261 = vmatmul.f32.gmra.mxu0 %v1198
  %v1262 = vpop.f32.mrf.mxu0
  %v1263 = vadd.f32 %v1159, %v1262
  %1264 = vmatmul.f32.gmra.mxu0 %v1201
  %v1265 = vpop.f32.mrf.mxu0
  %v1266 = vadd.f32 %v1159, %v1265
  %1267 = vmatmul.f32.gmra.mxu0 %v1204
  %v1268 = vpop.f32.mrf.mxu0
  %v1269 = vadd.f32 %v1159, %v1268
  %1270 = vmatmul.f32.gmra.mxu0 %v1207
  %v1271 = vpop.f32.mrf.mxu0
  %v1272 = vadd.f32 %v1159, %v1271
  %1273 = vdwg.mxu0
  %1290 = vrot.lane.b32.xlu0 %v1227, 16
  %v1291 = vpop.permute.xlu0 %1290
  %1292 = vrot.lane.b32.xlu0 %v1230, 16
  %v1293 = vpop.permute.xlu0 %1292
  %1294 = vrot.lane.b32.xlu0 %v1233, 16
  %v1295 = vpop.permute.xlu0 %1294
  %1296 = vrot.lane.b32.xlu0 %v1236, 16
  %v1297 = vpop.permute.xlu0 %1296
  %1298 = vrot.lane.b32.xlu0 %v1239, 16
  %v1299 = vpop.permute.xlu0 %1298
  %1300 = vrot.lane.b32.xlu0 %v1242, 16
  %v1301 = vpop.permute.xlu0 %1300
  %1302 = vrot.lane.b32.xlu0 %v1245, 16
  %v1303 = vpop.permute.xlu0 %1302
  %1304 = vrot.lane.b32.xlu0 %v1248, 16
  %v1305 = vpop.permute.xlu0 %1304
  %1306 = vrot.lane.b32.xlu0 %v1251, 16
  %v1307 = vpop.permute.xlu0 %1306
  %1308 = vrot.lane.b32.xlu0 %v1254, 16
  %v1309 = vpop.permute.xlu0 %1308
  %1310 = vrot.lane.b32.xlu0 %v1257, 16
  %v1311 = vpop.permute.xlu0 %1310
  %1312 = vrot.lane.b32.xlu0 %v1260, 16
  %v1313 = vpop.permute.xlu0 %1312
  %1314 = vrot.lane.b32.xlu0 %v1263, 16
  %v1315 = vpop.permute.xlu0 %1314
  %1316 = vrot.lane.b32.xlu0 %v1266, 16
  %v1317 = vpop.permute.xlu0 %1316
  %1318 = vrot.lane.b32.xlu0 %v1269, 16
  %v1319 = vpop.permute.xlu0 %1318
  %1320 = vrot.lane.b32.xlu0 %v1272, 16
  %v1321 = vpop.permute.xlu0 %1320
  %v1338 = vadd.f32 %v682, %v1291
  %v1339 = vadd.f32 %v683, %v1293
  %v1340 = vadd.f32 %v684, %v1295
  %v1341 = vadd.f32 %v685, %v1297
  %v1342 = vadd.f32 %v686, %v1299
  %v1343 = vadd.f32 %v687, %v1301
  %v1344 = vadd.f32 %v688, %v1303
  %v1345 = vadd.f32 %v689, %v1305
  %v1346 = vadd.f32 %v690, %v1307
  %v1347 = vadd.f32 %v691, %v1309
  %v1348 = vadd.f32 %v692, %v1311
  %v1349 = vadd.f32 %v693, %v1313
  %v1350 = vadd.f32 %v694, %v1315
  %v1351 = vadd.f32 %v695, %v1317
  %v1352 = vadd.f32 %v696, %v1319
  %v1353 = vadd.f32 %v697, %v1321
  %v1354 = vsel %vm111, %v994, %v1338
  %v1355 = vsel %vm111, %v995, %v1339
  %v1356 = vsel %vm111, %v996, %v1340
  %v1357 = vsel %vm111, %v997, %v1341
  %v1358 = vsel %vm111, %v998, %v1342
  %v1359 = vsel %vm111, %v999, %v1343
  %v1360 = vsel %vm111, %v1000, %v1344
  %v1361 = vsel %vm111, %v1001, %v1345
  %v1362 = vsel %vm111, %v1002, %v1346
  %v1363 = vsel %vm111, %v1003, %v1347
  %v1364 = vsel %vm111, %v1004, %v1348
  %v1365 = vsel %vm111, %v1005, %v1349
  %v1366 = vsel %vm111, %v1006, %v1350
  %v1367 = vsel %vm111, %v1007, %v1351
  %v1368 = vsel %vm111, %v1008, %v1352
  %v1369 = vsel %vm111, %v1009, %v1353
  %vm1370 = vcmask 261120
  %1371 = vst.msk [vmem:[%s9] sm:$0xff] %vm1370, %v1354
  %1372 = vst.msk [vmem:[%s9 + $0x8] sm:$0xff] %vm1370, %v1355
  %1373 = vst.msk [vmem:[%s9 + $0x10] sm:$0xff] %vm1370, %v1356
  %1374 = vst.msk [vmem:[%s9 + $0x18] sm:$0xff] %vm1370, %v1357
  %1375 = vst.msk [vmem:[%s9 + $0x20] sm:$0xff] %vm1370, %v1358
  %1376 = vst.msk [vmem:[%s9 + $0x28] sm:$0xff] %vm1370, %v1359
  %1377 = vst.msk [vmem:[%s9 + $0x30] sm:$0xff] %vm1370, %v1360
  %1378 = vst.msk [vmem:[%s9 + $0x38] sm:$0xff] %vm1370, %v1361
  %1379 = vst.msk [vmem:[%s9 + $0x40] sm:$0xff] %vm1370, %v1362
  %1380 = vst.msk [vmem:[%s9 + $0x48] sm:$0xff] %vm1370, %v1363
  %1381 = vst.msk [vmem:[%s9 + $0x50] sm:$0xff] %vm1370, %v1364
  %1382 = vst.msk [vmem:[%s9 + $0x58] sm:$0xff] %vm1370, %v1365
  %1383 = vst.msk [vmem:[%s9 + $0x60] sm:$0xff] %vm1370, %v1366
  %1384 = vst.msk [vmem:[%s9 + $0x68] sm:$0xff] %vm1370, %v1367
  %1385 = vst.msk [vmem:[%s9 + $0x70] sm:$0xff] %vm1370, %v1368
  %1386 = vst.msk [vmem:[%s9 + $0x78] sm:$0xff] %vm1370, %v1369
  // Predicated region
  $region38: #{tpu_custom_call.1} parent=0 // pred_check
    _
  $region39: #{tpu_custom_call.1} parent=0 // pred_check_branch
    %1388 = sbr.rel (0) target = $region41
  $region40: #{tpu_custom_call.1} parent=0 // pred_region
    _
  $region41: #{tpu_custom_call.1} parent=0 // pred_fallthru
    _
  // Predicated region
  $region42: #{tpu_custom_call.1} parent=0 // pred_check
    _
  $region43: #{tpu_custom_call.1} parent=0 // pred_check_branch
    %1390 = sbr.rel (0) target = $region45
  $region44: #{tpu_custom_call.1} parent=0 // pred_region
    _
  $region45: #{tpu_custom_call.1} parent=0 // pred_fallthru
    _

</llo_original>
